<compile_context>
chip_gen: v7x
topology: tpu7x:2x2x1
jax: 0.10.0
libtpu: 0.0.40
codegen_flags: <defaults>
</compile_context>

<pallas_src>
import functools

import jax
import jax.numpy as jnp
from jax.experimental import pallas as pl
from jax.experimental.pallas import tpu as pltpu


def _round_up(x, m):
    return ((x + m - 1) // m) * m


def _cdiv(a, b):
    return (a + b - 1) // b


def _physical_vmem_bytes():
    try:
        return int(pltpu.get_tpu_info().vmem_capacity_bytes)
    except Exception:
        return 64 * 1024 * 1024          # conservative fallback: v7x per-TC VMEM


def _vmem_limit(need_bytes):
    """Scoped-VMEM cap: generous on v5e/v6e (128 MiB), headroom-safe on v7x (64 MiB)."""
    phys = _physical_vmem_bytes()
    limit = max(need_bytes + (8 << 20), 32 << 20)     # headroom over the block estimate
    limit = min(limit, (3 * phys) // 4)               # never claim >75% of physical VMEM
    return int(max(limit, need_bytes + (2 << 20)))    # but never below what we need


def _fold_bn(weight, gamma, beta, running_mean, running_var, eps, c_out_p, compute_dtype):
    """Fold eval-mode BatchNorm into the conv weights and a single per-channel bias."""
    c_out = weight.shape[0]
    scale = gamma / jnp.sqrt(running_var + eps)                                   # (C_out,)
    bias = jnp.pad(beta - running_mean * scale, (0, c_out_p - c_out))
    bias = bias.reshape(1, c_out_p).astype(jnp.float32)
    w = (weight * scale[:, None, None, None]).transpose(2, 3, 1, 0)               # (kh,kw,Cin,Cout)
    w = jnp.pad(w, ((0, 0), (0, 0), (0, 0), (0, c_out_p - c_out))).astype(compute_dtype)
    return w, bias                                                                # (kh,kw,Cin,Coutp)


def _gemm_bn_relu_kernel(p_ref, w_ref, b_ref, o_ref):
    """Folded-K path: all conv taps live in the contraction dim -> one MXU dot per tile.

    p_ref: (1, tile, K)        im2col patch rows (compute_dtype), K = kh*kw*C_in
    w_ref: (K, C_out_p)        BN-folded weights (compute_dtype)
    b_ref: (1, C_out_p)        folded BN bias (f32)
    o_ref: (1, tile, C_out_p)  output tile (lane-dense in C_out_p)
    """
    acc = jnp.dot(p_ref[0], w_ref[...], preferred_element_type=jnp.float32)
    o_ref[0] = jnp.maximum(acc + b_ref[...], 0.0).astype(o_ref.dtype)


def _taps_bn_relu_kernel(a_ref, w_ref, b_ref, o_ref, *, taps, tile_m):
    """Resident-slab path (C_in >= 128): one full-K dot per conv tap, static row offsets.

    a_ref: (1, L_pad, C_in)         flattened padded image of batch n (compute_dtype)
    w_ref: (kh*kw, C_in, C_out_p)   BN-folded weights (compute_dtype)
    """
    base = pl.multiple_of(pl.program_id(1) * tile_m, tile_m)
    acc = jnp.zeros((tile_m, o_ref.shape[-1]), jnp.float32)
    for t, off in enumerate(taps):                      # static unroll over kh*kw taps
        win = a_ref[0, pl.ds(base + off, tile_m), :]    # already compute_dtype (no cast)
        acc = acc + jnp.dot(win, w_ref[t], preferred_element_type=jnp.float32)
    o_ref[0] = jnp.maximum(acc + b_ref[...], 0.0).astype(o_ref.dtype)


def basic_conv2d_nhwc(x_nhwc, weight, gamma, beta, running_mean, running_var, *,
                      kh, kw, pad, stride=1, tile_m=512,
                      compute_dtype=jnp.bfloat16, out_dtype=None, eps=1e-3):
    """Fused Conv2d(bias=False) + BatchNorm2d(eval) + ReLU.  NHWC in / NHWC out."""
    N, H, W, C_in = x_nhwc.shape
    C_out = weight.shape[0]
    out_dtype = x_nhwc.dtype if out_dtype is None else out_dtype
    Hp, Wp = H + 2 * pad, W + 2 * pad
    H_out = (Hp - kh) // stride + 1
    W_out = (Wp - kw) // stride + 1
    C_out_p = _round_up(C_out, 128)                 # lane-dense stores / full MXU columns

    w4, bias = _fold_bn(weight, gamma, beta, running_mean, running_var,
                        eps, C_out_p, compute_dtype)

    # Single pad + cast of the input (compute_dtype slab: half the DMA / VMEM vs f32).
    xp = jnp.pad(x_nhwc, ((0, 0), (pad, pad), (pad, pad), (0, 0))).astype(compute_dtype)

    out_itm = jnp.dtype(out_dtype).itemsize
    cmp_itm = jnp.dtype(compute_dtype).itemsize

    use_folded_k = (C_in < 128) or (stride != 1)

    if use_folded_k:
        # ---- im2col path: fold kh*kw taps into the GEMM K dimension ----
        K = kh * kw * C_in
        cols = [xp[:, dh:dh + (H_out - 1) * stride + 1:stride,
                   dw:dw + (W_out - 1) * stride + 1:stride, :]
                for dh in range(kh) for dw in range(kw)]
        patches = jnp.concatenate(cols, axis=-1).reshape(N, H_out * W_out, K)

        M = H_out * W_out
        tile = min(tile_m, _round_up(M, 8))
        if N * _cdiv(M, tile) < 2 and M >= 16:      # keep both v7x TensorCores busy
            tile = _round_up(_cdiv(M, 2), 8)
        M_pad = _round_up(M, tile)
        patches = jnp.pad(patches, ((0, 0), (0, M_pad - M), (0, 0)))
        w = w4.reshape(K, C_out_p)

        need = 2 * (tile * K * cmp_itm + K * C_out_p * cmp_itm + C_out_p * 4) \
            + 2 * tile * C_out_p * out_itm

        out = pl.pallas_call(
            _gemm_bn_relu_kernel,
            out_shape=jax.ShapeDtypeStruct((N, M_pad, C_out_p), out_dtype),
            grid_spec=pltpu.PrefetchScalarGridSpec(
                num_scalar_prefetch=0,
                grid=(N, M_pad // tile),
                in_specs=[
                    pl.BlockSpec((1, tile, K), lambda n, m: (n, m, 0)),
                    pl.BlockSpec((K, C_out_p), lambda n, m: (0, 0)),
                    pl.BlockSpec((1, C_out_p), lambda n, m: (0, 0)),
                ],
                out_specs=pl.BlockSpec((1, tile, C_out_p), lambda n, m: (n, m, 0)),
            ),
            compiler_params=pltpu.CompilerParams(
                dimension_semantics=("parallel", "parallel"),
                vmem_limit_bytes=_vmem_limit(need)),
        )(patches, w, bias)

        return out[:, :M, :C_out].reshape(N, H_out, W_out, C_out)

    # ---- resident-slab path (C_in >= 128): static tap offsets into a flat slab ----
    # TODO(synk): stride > 1 is routed through the folded-K path above; the slab trick
    #             here assumes stride == 1.
    assert stride == 1
    M = H_out * Wp                      # includes (kw-1) garbage cols/row; sliced off below
    tile = min(tile_m, _round_up(M, 8))
    if N * _cdiv(M, tile) < 2 and M >= 16:
        tile = _round_up(_cdiv(M, 2), 8)
    M_pad = _round_up(M, tile)
    max_off = (kh - 1) * Wp + (kw - 1)
    L_pad = _round_up(M_pad + max_off, 8)

    a = xp.reshape(N, Hp * Wp, C_in)
    a = jnp.pad(a, ((0, 0), (0, L_pad - Hp * Wp), (0, 0)))
    w = w4.reshape(kh * kw, C_in, C_out_p)
    taps = tuple(dh * Wp + dw for dh in range(kh) for dw in range(kw))

    need = 2 * (L_pad * C_in * cmp_itm + kh * kw * C_in * C_out_p * cmp_itm
                + C_out_p * 4) + 2 * tile * C_out_p * out_itm

    kernel = functools.partial(_taps_bn_relu_kernel, taps=taps, tile_m=tile)
    out = pl.pallas_call(
        kernel,
        out_shape=jax.ShapeDtypeStruct((N, M_pad, C_out_p), out_dtype),
        grid_spec=pltpu.PrefetchScalarGridSpec(
            num_scalar_prefetch=0,
            grid=(N, M_pad // tile),
            in_specs=[
                pl.BlockSpec((1, L_pad, C_in), lambda n, m: (n, 0, 0)),
                pl.BlockSpec((kh * kw, C_in, C_out_p), lambda n, m: (0, 0, 0)),
                pl.BlockSpec((1, C_out_p), lambda n, m: (0, 0)),
            ],
            out_specs=pl.BlockSpec((1, tile, C_out_p), lambda n, m: (n, m, 0)),
        ),
        compiler_params=pltpu.CompilerParams(
            dimension_semantics=("parallel", "parallel"),
            vmem_limit_bytes=_vmem_limit(need)),
    )(a, w, bias)

    out = out[:, :M, :C_out].reshape(N, H_out, Wp, C_out)[:, :, :W_out, :]
    return out


@functools.partial(jax.jit, static_argnames=("kh", "kw", "pad", "stride", "tile_m",
                                             "compute_dtype", "out_dtype", "eps"))
def basic_conv2d(x, weight, gamma, beta, running_mean, running_var, *,
                 kh, kw, pad, stride=1, tile_m=512,
                 compute_dtype=jnp.bfloat16, out_dtype=None, eps=1e-3):
    """NCHW wrapper matching the PyTorch BasicConv2d module's layout.

    Prefer basic_conv2d_nhwc end-to-end to avoid the NCHW<->NHWC transpose round trips.
    """
    y = basic_conv2d_nhwc(jnp.transpose(x, (0, 2, 3, 1)), weight, gamma, beta,
                          running_mean, running_var, kh=kh, kw=kw, pad=pad, stride=stride,
                          tile_m=tile_m, compute_dtype=compute_dtype,
                          out_dtype=out_dtype, eps=eps)
    return jnp.transpose(y, (0, 3, 1, 2))


def _reference(x, weight, gamma, beta, running_mean, running_var, pad, stride=1, eps=1e-3):
    """Pure-JAX reference of BasicConv2d.forward (eval-mode BN)."""
    y = jax.lax.conv_general_dilated(
        x, weight, window_strides=(stride, stride), padding=((pad, pad), (pad, pad)),
        dimension_numbers=("NCHW", "OIHW", "NCHW"))
    scale = gamma / jnp.sqrt(running_var + eps)
    y = y * scale[None, :, None, None] + (beta - running_mean * scale)[None, :, None, None]
    return jnp.maximum(y, 0.0)


if __name__ == "__main__":
    # Shapes consistent with BasicConv2d(in_channels=4, out_channels=8, kernel_size=3,
    # padding=1) on a (2, 4, 16, 16) NCHW input.
    N, C_in, H, W = 2, 4, 16, 16
    C_out, kh, kw, pad = 8, 3, 3, 1

    key = jax.random.PRNGKey(0)
    k_x, k_w, k_g, k_b, k_m, k_v = jax.random.split(key, 6)

    x = jax.random.normal(k_x, (N, C_in, H, W), dtype=jnp.float32)
    weight = jax.random.normal(k_w, (C_out, C_in, kh, kw), dtype=jnp.float32) * 0.1
    gamma = 1.0 + 0.1 * jax.random.normal(k_g, (C_out,), dtype=jnp.float32)
    beta = 0.1 * jax.random.normal(k_b, (C_out,), dtype=jnp.float32)
    running_mean = 0.1 * jax.random.normal(k_m, (C_out,), dtype=jnp.float32)
    running_var = jnp.abs(jax.random.normal(k_v, (C_out,), dtype=jnp.float32)) + 0.5

    # stride = 1 (module default)
    y = basic_conv2d(x, weight, gamma, beta, running_mean, running_var,
                     kh=kh, kw=kw, pad=pad)
    jax.block_until_ready(y)
    assert y.shape == (N, C_out, H, W), y.shape
    assert bool(jnp.all(y >= 0.0))                     # ReLU
    y_ref = _reference(x, weight, gamma, beta, running_mean, running_var, pad, stride=1)
    max_err = float(jnp.max(jnp.abs(y - y_ref)))       # loose tol: bf16 MXU operands
    assert max_err < 1e-1, max_err

    # stride = 2 (common in Inception reduction / stem blocks) — handled by folded-K path
    y2 = basic_conv2d(x, weight, gamma, beta, running_mean, running_var,
                      kh=kh, kw=kw, pad=pad, stride=2)
    jax.block_until_ready(y2)
    y2_ref = _reference(x, weight, gamma, beta, running_mean, running_var, pad, stride=2)
    assert y2.shape == y2_ref.shape, (y2.shape, y2_ref.shape)
    max_err2 = float(jnp.max(jnp.abs(y2 - y2_ref)))
    assert max_err2 < 1e-1, max_err2

    print("KERNEL_OK")
</pallas_src>

<mosaic_0001>
module attributes {stable_mosaic.version = 11 : i64} {
  func.func @_gemm_bn_relu_kernel(%arg0: i32, %arg1: i32, %arg2: memref<1x256x36xbf16, #tpu.memory_space<vmem>>, %arg3: memref<36x128xbf16, #tpu.memory_space<vmem>>, %arg4: memref<1x128xf32, #tpu.memory_space<vmem>>, %arg5: memref<1x256x128xf32, #tpu.memory_space<vmem>>) attributes {dimension_semantics = [#tpu.dimension_semantics<parallel>, #tpu.dimension_semantics<parallel>], iteration_bounds = array<i64: 2, 1>, scalar_prefetch = 0 : i64, scratch_operands = 0 : i64, tpu.core_type = #tpu.core_type<tc>, window_params = [{transform_indices = @transform_0, window_bounds = array<i64: 1, 256, 36>}, {pipeline_mode = #tpu.pipeline_mode<synchronous>, transform_indices = @transform_1, window_bounds = array<i64: 36, 128>}, {pipeline_mode = #tpu.pipeline_mode<synchronous>, transform_indices = @transform_2, window_bounds = array<i64: 1, 128>}, {transform_indices = @transform_3, window_bounds = array<i64: 1, 256, 128>}]} {
    %c0 = arith.constant 0 : index
    %c0_0 = arith.constant 0 : index
    %c0_1 = arith.constant 0 : index
    %0 = vector.load %arg2[%c0, %c0_0, %c0_1] : memref<1x256x36xbf16, #tpu.memory_space<vmem>>, vector<1x256x36xbf16>
    %1 = vector.shape_cast %0 : vector<1x256x36xbf16> to vector<256x36xbf16>
    %c0_2 = arith.constant 0 : index
    %c0_3 = arith.constant 0 : index
    %2 = vector.load %arg3[%c0_2, %c0_3] : memref<36x128xbf16, #tpu.memory_space<vmem>>, vector<36x128xbf16>
    %cst = arith.constant dense<0.000000e+00> : vector<256x128xf32>
    %3 = tpu.matmul %1, %2, %cst {dimension_numbers = #tpu.dot_dimension_numbers<[1], [0], [0], [1], [0, 0, 1, 1], [], []>} : vector<256x36xbf16>, vector<36x128xbf16>, vector<256x128xf32> -> vector<256x128xf32>
    %c0_4 = arith.constant 0 : index
    %c0_5 = arith.constant 0 : index
    %4 = vector.load %arg4[%c0_4, %c0_5] : memref<1x128xf32, #tpu.memory_space<vmem>>, vector<1x128xf32>
    %5 = vector.broadcast %4 : vector<1x128xf32> to vector<256x128xf32>
    %6 = arith.addf %3, %5 : vector<256x128xf32>
    %cst_6 = arith.constant 0.000000e+00 : f32
    %7 = vector.broadcast %cst_6 : f32 to vector<256x128xf32>
    %8 = arith.maximumf %6, %7 : vector<256x128xf32>
    %c0_7 = arith.constant 0 : index
    %c0_8 = arith.constant 0 : index
    %c0_9 = arith.constant 0 : index
    %9 = vector.load %arg5[%c0_7, %c0_8, %c0_9] : memref<1x256x128xf32, #tpu.memory_space<vmem>>, vector<1x256x128xf32>
    %10 = vector.shape_cast %9 : vector<1x256x128xf32> to vector<256x128xf32>
    %11 = vector.shape_cast %8 : vector<256x128xf32> to vector<1x256x128xf32>
    tpu.vector_store %arg5[%c0_7, %c0_8, %c0_9], %11 {strides = array<i32>} : memref<1x256x128xf32, #tpu.memory_space<vmem>>, vector<1x256x128xf32>,
    return
  }
  func.func @transform_0(%arg0: i32, %arg1: i32) -> (i32, i32, i32) {
    %c0_i32 = arith.constant 0 : i32
    %c0_i32_0 = arith.constant 0 : i32
    return %arg0, %arg1, %c0_i32 : i32, i32, i32
  }
  func.func @transform_1(%arg0: i32, %arg1: i32) -> (i32, i32) {
    %c0_i32 = arith.constant 0 : i32
    %c0_i32_0 = arith.constant 0 : i32
    %c0_i32_1 = arith.constant 0 : i32
    return %c0_i32, %c0_i32_0 : i32, i32
  }
  func.func @transform_2(%arg0: i32, %arg1: i32) -> (i32, i32) {
    %c0_i32 = arith.constant 0 : i32
    %c0_i32_0 = arith.constant 0 : i32
    %c0_i32_1 = arith.constant 0 : i32
    return %c0_i32, %c0_i32_0 : i32, i32
  }
  func.func @transform_3(%arg0: i32, %arg1: i32) -> (i32, i32, i32) {
    %c0_i32 = arith.constant 0 : i32
    %c0_i32_0 = arith.constant 0 : i32
    return %arg0, %arg1, %c0_i32 : i32, i32, i32
  }
}

</mosaic_0001>

<llo_original>
// kernel: basic_conv2d.1
$region0: #{basic_conv2d.1}
  #allocation0 [shape = 'u32[]', space=smem, size = 0x4, offset = 0x4, fixed_abs, tag = 'smem constant byte address 0x4 - core index']
  #allocation1 [shape = 'u32[144,128]{1,0:T(1,128)}', space=vmem, size = 0x12000, scoped, tag = 'internal scratch']
  %s0 = inlined_call_operand.vmem [shape: bf16[2,256,36], index: 0, kind: input, shape index: {}]
  %s1 = inlined_call_operand.vmem [shape: bf16[36,128], index: 1, kind: input, shape index: {}]
  %s2 = inlined_call_operand.vmem [shape: f32[1,128], index: 2, kind: input, shape index: {}]
  %s3 = inlined_call_operand.vmem [shape: f32[2,256,128], index: 3, kind: output, shape index: {}]
  %s4 = sld [smem:[#allocation0]]
  $region45: #{basic_conv2d.1} parent=0
    _
  %s6 = ssub.s32 1, %s4
  %s7 = scalar_select 0, %s6, %s4
  loop: start=0, step=1, limit=4
  $region2: #{basic_conv2d.1} parent=0 // loop_pre_header
    _
  $region3: #{basic_conv2d.1} parent=0 // loop_header
    %s9 = sphi 0, %s13
    %p10 = scmp.ge.s32.totalorder %s9, 4
    %s16 = sphi 0, %s28
    %s17 = sphi 0, %s24
    %s18 = sphi 0, %s16
    %s19 = sphi 0, %s17
    %s20 = sphi 0, %s18
    %s21 = sphi 0, %s19
    %s33 = sphi 0, %s35
    %s36 = sphi 0, %s33
    %s37 = sphi 0, %s36
    %s53 = sphi 0, %s37
    %s57 = sphi 0, %s57
    %s59 = sphi 0, %s57
    %s60 = sphi 0, %s59
    %s74 = sphi 0, %s60
    %s78 = sphi 0, %s78
    %s80 = sphi 0, %s78
    %s81 = sphi 0, %s80
    %s95 = sphi 0, %s81
    %s103 = sphi 0, %s105
    %s106 = sphi 0, %s103
    %s107 = sphi 0, %s106
    %s123 = sphi 0, %s107
  $region4: #{basic_conv2d.1} parent=0 // loop_header_branch
    %12 = sbr.rel (%p10) target = $region8
  $region5: #{basic_conv2d.1} parent=0 // loop_body
    %s14 = ssub.s32 %s9, 1
    %s15 = ssub.s32 %s9, 2
    %s22 = sadd.s32 1, %s17
    %p23 = scmp.ge.s32.totalorder %s22, 1
    %s24 = scalar_select %p23, 0, %s22
    %s25 = sadd.s32 1, %s16
    %s26 = scalar_select %p23, %s25, %s16
    %p27 = scmp.ge.s32.totalorder %s26, 2
    %s28 = scalar_select %p27, 0, %s26
    %s29 = ssub.s32 %s16, %s28
    %s30 = ssub.s32 %s17, %s24
    %s31 = sor.u32 %s29, %s30
    %p32 = scmp.eq.s32.totalorder %s31, 0
    %s34 = sadd.s32 %s33, 1
    %s35 = scalar_select %p32, %s33, %s34
    %p38 = pneg %p32
    %p39 = scmp.eq.s32.totalorder %s9, 1
    %p40 = por %p38, %p39
    %p41 = scmp.ne.s32.totalorder %s33, %s36
    %p42 = scmp.eq.s32.totalorder %s9, 0
    %p43 = por %p41, %p42
    %p44 = scmp.ne.s32.totalorder %s33, %s36
    %p45 = scmp.eq.s32.totalorder %s14, 1
    %p46 = por %p44, %p45
    %p47 = scmp.ne.s32.totalorder %s36, %s37
    %p48 = scmp.eq.s32.totalorder %s14, 0
    %p49 = por %p47, %p48
    %p50 = scmp.ne.s32.totalorder %s36, %s37
    %p51 = scmp.eq.s32.totalorder %s15, 1
    %p52 = por %p50, %p51
    %p54 = scmp.ne.s32.totalorder %s37, %s53
    %p55 = scmp.eq.s32.totalorder %s15, 0
    %p56 = por %p54, %p55
    %s58 = sadd.s32 %s57, 1
    %p61 = scmp.eq.s32.totalorder %s9, 1
    %p62 = scmp.ne.s32.totalorder %s57, %s59
    %p63 = scmp.eq.s32.totalorder %s9, 0
    %p64 = por %p62, %p63
    %p65 = scmp.ne.s32.totalorder %s57, %s59
    %p66 = scmp.eq.s32.totalorder %s14, 1
    %p67 = por %p65, %p66
    %p68 = scmp.ne.s32.totalorder %s59, %s60
    %p69 = scmp.eq.s32.totalorder %s14, 0
    %p70 = por %p68, %p69
    %p71 = scmp.ne.s32.totalorder %s59, %s60
    %p72 = scmp.eq.s32.totalorder %s15, 1
    %p73 = por %p71, %p72
    %p75 = scmp.ne.s32.totalorder %s60, %s74
    %p76 = scmp.eq.s32.totalorder %s15, 0
    %p77 = por %p75, %p76
    %s79 = sadd.s32 %s78, 1
    %p82 = scmp.eq.s32.totalorder %s9, 1
    %p83 = scmp.ne.s32.totalorder %s78, %s80
    %p84 = scmp.eq.s32.totalorder %s9, 0
    %p85 = por %p83, %p84
    %p86 = scmp.ne.s32.totalorder %s78, %s80
    %p87 = scmp.eq.s32.totalorder %s14, 1
    %p88 = por %p86, %p87
    %p89 = scmp.ne.s32.totalorder %s80, %s81
    %p90 = scmp.eq.s32.totalorder %s14, 0
    %p91 = por %p89, %p90
    %p92 = scmp.ne.s32.totalorder %s80, %s81
    %p93 = scmp.eq.s32.totalorder %s15, 1
    %p94 = por %p92, %p93
    %p96 = scmp.ne.s32.totalorder %s81, %s95
    %p97 = scmp.eq.s32.totalorder %s15, 0
    %p98 = por %p96, %p97
    %s99 = ssub.s32 %s16, %s28
    %s100 = ssub.s32 %s17, %s24
    %s101 = sor.u32 %s99, %s100
    %p102 = scmp.eq.s32.totalorder %s101, 0
    %s104 = sadd.s32 %s103, 1
    %s105 = scalar_select %p102, %s103, %s104
    %p108 = pneg %p102
    %p109 = scmp.eq.s32.totalorder %s9, 1
    %p110 = por %p108, %p109
    %p111 = scmp.ne.s32.totalorder %s103, %s106
    %p112 = scmp.eq.s32.totalorder %s9, 0
    %p113 = por %p111, %p112
    %p114 = scmp.ne.s32.totalorder %s103, %s106
    %p115 = scmp.eq.s32.totalorder %s14, 1
    %p116 = por %p114, %p115
    %p117 = scmp.ne.s32.totalorder %s106, %s107
    %p118 = scmp.eq.s32.totalorder %s14, 0
    %p119 = por %p117, %p118
    %p120 = scmp.ne.s32.totalorder %s106, %s107
    %p121 = scmp.eq.s32.totalorder %s15, 1
    %p122 = por %p120, %p121
    %p124 = scmp.ne.s32.totalorder %s107, %s123
    %p125 = scmp.eq.s32.totalorder %s15, 0
    %p126 = por %p124, %p125
    %p127 = scmp.le.s32.totalorder 1, %s9
    %p128 = scmp.lt.s32.totalorder %s9, 3
    %p129 = pnand %p127, %p128
    %p130 = pneg %p129
    // Predicated region
    $region9: #{basic_conv2d.1} parent=5 // pred_check
      _
    $region10: #{basic_conv2d.1} parent=5 // pred_check_branch
      %132 = sbr.rel (%p129) target = $region12
    $region11: #{basic_conv2d.1} parent=5 // pred_region
      %s133 = ssub.s32 %s9, 1
      // Predicated region
      $region13: #{basic_conv2d.1} parent=11 // pred_check
        %p134 = pneg %p70
      $region14: #{basic_conv2d.1} parent=11 // pred_check_branch
        %136 = sbr.rel (%p134) target = $region16
      $region15: #{basic_conv2d.1} parent=11 // pred_region
        _
      $region16: #{basic_conv2d.1} parent=11 // pred_fallthru
        _
      // Predicated region
      $region17: #{basic_conv2d.1} parent=11 // pred_check
        %p137 = pneg %p91
      $region18: #{basic_conv2d.1} parent=11 // pred_check_branch
        %139 = sbr.rel (%p137) target = $region20
      $region19: #{basic_conv2d.1} parent=11 // pred_region
        _
      $region20: #{basic_conv2d.1} parent=11 // pred_fallthru
        _
    $region12: #{basic_conv2d.1} parent=5 // pred_fallthru
      _
    %p140 = scmp.lt.s32.totalorder %s9, 2
    // Predicated region
    $region21: #{basic_conv2d.1} parent=5 // pred_check
      %p141 = pneg %p140
    $region22: #{basic_conv2d.1} parent=5 // pred_check_branch
      %143 = sbr.rel (%p141) target = $region24
    $region23: #{basic_conv2d.1} parent=5 // pred_region
      // Predicated region
      $region25: #{basic_conv2d.1} parent=23 // pred_check
        %p144 = pneg %p43
      $region26: #{basic_conv2d.1} parent=23 // pred_check_branch
        %146 = sbr.rel (%p144) target = $region28
      $region27: #{basic_conv2d.1} parent=23 // pred_region
        %s147 = smul.u32 32, %s17
        %p148 = scmp.lt.s32.totalorder %s16, 1
        %s149 = scalar_select %p148, %s16, 1
        %p150 = scmp.lt.s32.totalorder %s147, 31
        %s151 = scalar_select %p150, %s147, 31
        %s152 = smul.addr %s149, 32
        %s153 = sadd.s32 %s151, %s152
        %s154 = smul.addr %s153, 4
        %s155 = scalar_lea.vmem %s0, %s154
        %s156 = smul.u32 32, %s17
      $region28: #{basic_conv2d.1} parent=23 // pred_fallthru
        _
    $region24: #{basic_conv2d.1} parent=5 // pred_fallthru
      _
    %p157 = scmp.le.s32.totalorder 1, %s9
    %p158 = scmp.lt.s32.totalorder %s9, 3
    %p159 = pnand %p157, %p158
    %p160 = pneg %p159
    // Predicated region
    $region29: #{basic_conv2d.1} parent=5 // pred_check
      _
    $region30: #{basic_conv2d.1} parent=5 // pred_check_branch
      %162 = sbr.rel (%p159) target = $region32
    $region31: #{basic_conv2d.1} parent=5 // pred_region
      %s163 = ssub.s32 %s9, 1
      %s164 = smul.u32 32, %s19
      %p165 = scmp.lt.s32.totalorder %s18, 1
      %s166 = scalar_select %p165, %s18, 1
      %p167 = scmp.lt.s32.totalorder %s164, 31
      %s168 = scalar_select %p167, %s164, 31
      %s169 = smul.addr %s166, 32
      %s170 = sadd.s32 %s168, %s169
      %s171 = smul.addr %s170, 4
      %s172 = scalar_lea.vmem %s0, %s171
      %p173 = pneg %p49
      %p174 = pneg %p46
      %p175 = pneg %p70
      %p176 = pneg %p67
      %p177 = pneg %p91
      %p178 = pneg %p88
      %p179 = pneg %p119
      %p180 = pneg %p116
      %s181 = smul.u32 32, %s19
      %p182 = scmp.lt.s32.totalorder %s18, 1
      %s183 = scalar_select %p182, %s18, 1
      %p184 = scmp.lt.s32.totalorder %s181, 31
      %s185 = scalar_select %p184, %s181, 31
      %s186 = smul.addr %s183, 32
      %s187 = sadd.s32 %s185, %s186
      %s188 = smul.addr %s187, 8
      %s189 = scalar_lea.vmem %s3, %s188
      %s190 = smul.u32 32, %s19
      %p191 = scmp.lt.s32.totalorder %s18, 1
      %s192 = scalar_select %p191, %s18, 1
      %p193 = scmp.lt.s32.totalorder %s190, 31
      %s194 = scalar_select %p193, %s190, 31
      %s195 = smul.addr %s192, 32
      %s196 = sadd.s32 %s194, %s195
      %s197 = smul.addr %s196, 4
      %s198 = scalar_lea.vmem %s0, %s197
      %s199 = smul.u32 32, %s19
      %s200 = smul.u32 32, %s19
      %p201 = scmp.lt.s32.totalorder %s18, 1
      %s202 = scalar_select %p201, %s18, 1
      %p203 = scmp.lt.s32.totalorder %s200, 31
      %s204 = scalar_select %p203, %s200, 31
      %s205 = smul.addr %s202, 32
      %s206 = sadd.s32 %s204, %s205
      %s207 = smul.addr %s206, 8
      %s208 = scalar_lea.vmem %s3, %s207
      %s209 = smul.u32 32, %s19
      %v211 = vld [vmem:[%s198] sm:$0xf]
      %v212 = vld [vmem:[%s198 + $0x4] sm:$0xf]
      %v213 = vld [vmem:[%s198 + $0x8] sm:$0xf]
      %v214 = vld [vmem:[%s198 + $0xc] sm:$0xf]
      %v215 = vld [vmem:[%s198 + $0x10] sm:$0xf]
      %v216 = vld [vmem:[%s198 + $0x14] sm:$0xf]
      %v217 = vld [vmem:[%s198 + $0x18] sm:$0xf]
      %v218 = vld [vmem:[%s198 + $0x1c] sm:$0xf]
      %v219 = vld [vmem:[%s198 + $0x20] sm:$0xf]
      %v220 = vld [vmem:[%s198 + $0x24] sm:$0xf]
      %v221 = vld [vmem:[%s198 + $0x28] sm:$0xf]
      %v222 = vld [vmem:[%s198 + $0x2c] sm:$0xf]
      %v223 = vld [vmem:[%s198 + $0x30] sm:$0xf]
      %v224 = vld [vmem:[%s198 + $0x34] sm:$0xf]
      %v225 = vld [vmem:[%s198 + $0x38] sm:$0xf]
      %v226 = vld [vmem:[%s198 + $0x3c] sm:$0xf]
      %v227 = vld [vmem:[%s198 + $0x40] sm:$0xf]
      %v228 = vld [vmem:[%s198 + $0x44] sm:$0xf]
      %v229 = vld [vmem:[%s198 + $0x48] sm:$0xf]
      %v230 = vld [vmem:[%s198 + $0x4c] sm:$0xf]
      %v231 = vld [vmem:[%s198 + $0x50] sm:$0xf]
      %v232 = vld [vmem:[%s198 + $0x54] sm:$0xf]
      %v233 = vld [vmem:[%s198 + $0x58] sm:$0xf]
      %v234 = vld [vmem:[%s198 + $0x5c] sm:$0xf]
      %v235 = vld [vmem:[%s198 + $0x60] sm:$0xf]
      %v236 = vld [vmem:[%s198 + $0x64] sm:$0xf]
      %v237 = vld [vmem:[%s198 + $0x68] sm:$0xf]
      %v238 = vld [vmem:[%s198 + $0x6c] sm:$0xf]
      %v239 = vld [vmem:[%s198 + $0x70] sm:$0xf]
      %v240 = vld [vmem:[%s198 + $0x74] sm:$0xf]
      %v241 = vld [vmem:[%s198 + $0x78] sm:$0xf]
      %v242 = vld [vmem:[%s198 + $0x7c] sm:$0xf]
      %v243 = vld [vmem:[%s1] sm:$0xf]
      %v244 = vld [vmem:[%s1 + $0x4] sm:$0xf]
      %v245 = vld [vmem:[%s1 + $0x8] sm:$0xf]
      %v246 = vld [vmem:[%s1 + $0xc] sm:$0xf]
      %v247 = vld [vmem:[%s1 + $0x10] sm:$0x3]
      %v248 = vld [vmem:[%s2] sm:$0x1]
      %v250 = vlaneseq
      %v251 = vshrl.u32 %v250, 7
      %v252 = vsub.s32 0, %v251
      %v253 = vrot.slane %v248, %v252
      %v287 = vunpack.c.l.b16 %v211
      %v288 = vunpack.c.l.b16 %v212
      %v289 = vunpack.c.l.b16 %v213
      %v290 = vunpack.c.l.b16 %v214
      %v291 = vunpack.c.l.b16 %v215
      %v292 = vunpack.c.l.b16 %v216
      %v293 = vunpack.c.l.b16 %v217
      %v294 = vunpack.c.l.b16 %v218
      %v295 = vunpack.c.l.b16 %v219
      %v296 = vunpack.c.l.b16 %v220
      %v297 = vunpack.c.l.b16 %v221
      %v298 = vunpack.c.l.b16 %v222
      %v299 = vunpack.c.l.b16 %v223
      %v300 = vunpack.c.l.b16 %v224
      %v301 = vunpack.c.l.b16 %v225
      %v302 = vunpack.c.l.b16 %v226
      %v303 = vunpack.c.l.b16 %v227
      %v304 = vunpack.c.l.b16 %v228
      %v305 = vunpack.c.l.b16 %v229
      %v306 = vunpack.c.l.b16 %v230
      %v307 = vunpack.c.l.b16 %v231
      %v308 = vunpack.c.l.b16 %v232
      %v309 = vunpack.c.l.b16 %v233
      %v310 = vunpack.c.l.b16 %v234
      %v311 = vunpack.c.l.b16 %v235
      %v312 = vunpack.c.l.b16 %v236
      %v313 = vunpack.c.l.b16 %v237
      %v314 = vunpack.c.l.b16 %v238
      %v315 = vunpack.c.l.b16 %v239
      %v316 = vunpack.c.l.b16 %v240
      %v317 = vunpack.c.l.b16 %v241
      %v318 = vunpack.c.l.b16 %v242
      %v319 = vpack.c.b16 %v288, %v287
      %v320 = vpack.c.b16 %v290, %v289
      %v321 = vpack.c.b16 %v292, %v291
      %v322 = vpack.c.b16 %v294, %v293
      %v323 = vpack.c.b16 %v296, %v295
      %v324 = vpack.c.b16 %v298, %v297
      %v325 = vpack.c.b16 %v300, %v299
      %v326 = vpack.c.b16 %v302, %v301
      %v327 = vpack.c.b16 %v304, %v303
      %v328 = vpack.c.b16 %v306, %v305
      %v329 = vpack.c.b16 %v308, %v307
      %v330 = vpack.c.b16 %v310, %v309
      %v331 = vpack.c.b16 %v312, %v311
      %v332 = vpack.c.b16 %v314, %v313
      %v333 = vpack.c.b16 %v316, %v315
      %v334 = vpack.c.b16 %v318, %v317
      %v340 = vunpack.c.l.b16 %v243
      %v341 = vunpack.c.l.b16 %v244
      %v342 = vunpack.c.l.b16 %v245
      %v343 = vunpack.c.l.b16 %v246
      %v344 = vunpack.c.l.b16 %v247
      %v345 = vpack.c.b16 %v341, %v340
      %v346 = vpack.c.b16 %v343, %v342
      %v347 = vpack.c.b16 %v344, %v344
      %vm350 = vcmask 293888
      %v352 = vsel %vm350, %v319, 0
      %v355 = vsel %vm350, %v320, 0
      %v358 = vsel %vm350, %v321, 0
      %v361 = vsel %vm350, %v322, 0
      %v364 = vsel %vm350, %v323, 0
      %v367 = vsel %vm350, %v324, 0
      %v370 = vsel %vm350, %v325, 0
      %v373 = vsel %vm350, %v326, 0
      %v376 = vsel %vm350, %v327, 0
      %v379 = vsel %vm350, %v328, 0
      %v382 = vsel %vm350, %v329, 0
      %v385 = vsel %vm350, %v330, 0
      %v388 = vsel %vm350, %v331, 0
      %v391 = vsel %vm350, %v332, 0
      %v394 = vsel %vm350, %v333, 0
      %v397 = vsel %vm350, %v334, 0
      %vm399 = vcmask 1041408
      %v401 = vsel %vm399, %v347, 0
      %403 = vmatprep.subr.bf16.mxu0 0
      %404 = vmatpush1.bf16.msra.mxu0 %v345
      %405 = vmatprep.subr.bf16.mxu0 0
      %406 = vmatpush1.bf16.msra.mxu0 %v346
      %407 = vmatprep.subr.bf16.mxu0 0
      %408 = vmatpush1.bf16.msra.mxu0 %v401
      %409 = vmatprep.subr.bf16.mxu0 0
      %410 = vmatpush1.bf16.msra.mxu0 0
      %411 = vmatprep.subr.bf16.mxu0 0
      %412 = vmatpush1.bf16.msra.mxu0 0
      %413 = vmatprep.subr.bf16.mxu0 0
      %414 = vmatpush1.bf16.msra.mxu0 0
      %415 = vmatprep.subr.bf16.mxu0 0
      %416 = vmatpush1.bf16.msra.mxu0 0
      %417 = vmatprep.subr.bf16.mxu0 0
      %418 = vmatpush1.bf16.msra.mxu0 0
      %419 = vmatprep.subr.bf16.mxu0 0
      %420 = vmatpush1.bf16.msra.mxu0 0
      %421 = vmatprep.subr.bf16.mxu0 0
      %422 = vmatpush1.bf16.msra.mxu0 0
      %423 = vmatprep.subr.bf16.mxu0 0
      %424 = vmatpush1.bf16.msra.mxu0 0
      %425 = vmatprep.subr.bf16.mxu0 0
      %426 = vmatpush1.bf16.msra.mxu0 0
      %427 = vmatprep.subr.bf16.mxu0 0
      %428 = vmatpush1.bf16.msra.mxu0 0
      %429 = vmatprep.subr.bf16.mxu0 0
      %430 = vmatpush1.bf16.msra.mxu0 0
      %431 = vmatprep.subr.bf16.mxu0 0
      %432 = vmatpush1.bf16.msra.mxu0 0
      %433 = vmatprep.subr.bf16.mxu0 0
      %434 = vmatpush1.bf16.msra.mxu0 0
      %435 = vmatprep.mubr.bf16.mxu0 0
      %436 = vmatmul.mubr.bf16.gmra.mrb[0].mxu0 %v352
      %v437 = vpop.f32.mrb[0].mxu0
      %v438 = vadd.f32 %v253, %v437
      %v439 = vpop.f32.mrb[0].mxu0
      %v440 = vpop.f32.mrb[0].mxu0
      %v441 = vadd.f32 %v253, %v440
      %v442 = vpop.f32.mrb[0].mxu0
      %443 = vmatprep.mubr.bf16.mxu0 0
      %444 = vmatmul.mubr.bf16.gmra.mrb[0].mxu0 %v355
      %v445 = vpop.f32.mrb[0].mxu0
      %v446 = vadd.f32 %v253, %v445
      %v447 = vpop.f32.mrb[0].mxu0
      %v448 = vpop.f32.mrb[0].mxu0
      %v449 = vadd.f32 %v253, %v448
      %v450 = vpop.f32.mrb[0].mxu0
      %451 = vmatprep.mubr.bf16.mxu0 0
      %452 = vmatmul.mubr.bf16.gmra.mrb[0].mxu0 %v358
      %v453 = vpop.f32.mrb[0].mxu0
      %v454 = vadd.f32 %v253, %v453
      %v455 = vpop.f32.mrb[0].mxu0
      %v456 = vpop.f32.mrb[0].mxu0
      %v457 = vadd.f32 %v253, %v456
      %v458 = vpop.f32.mrb[0].mxu0
      %459 = vmatprep.mubr.bf16.mxu0 0
      %460 = vmatmul.mubr.bf16.gmra.mrb[0].mxu0 %v361
      %v461 = vpop.f32.mrb[0].mxu0
      %v462 = vadd.f32 %v253, %v461
      %v463 = vpop.f32.mrb[0].mxu0
      %v464 = vpop.f32.mrb[0].mxu0
      %v465 = vadd.f32 %v253, %v464
      %v466 = vpop.f32.mrb[0].mxu0
      %467 = vmatprep.mubr.bf16.mxu0 0
      %468 = vmatmul.mubr.bf16.gmra.mrb[0].mxu0 %v364
      %v469 = vpop.f32.mrb[0].mxu0
      %v470 = vadd.f32 %v253, %v469
      %v471 = vpop.f32.mrb[0].mxu0
      %v472 = vpop.f32.mrb[0].mxu0
      %v473 = vadd.f32 %v253, %v472
      %v474 = vpop.f32.mrb[0].mxu0
      %475 = vmatprep.mubr.bf16.mxu0 0
      %476 = vmatmul.mubr.bf16.gmra.mrb[0].mxu0 %v367
      %v477 = vpop.f32.mrb[0].mxu0
      %v478 = vadd.f32 %v253, %v477
      %v479 = vpop.f32.mrb[0].mxu0
      %v480 = vpop.f32.mrb[0].mxu0
      %v481 = vadd.f32 %v253, %v480
      %v482 = vpop.f32.mrb[0].mxu0
      %483 = vmatprep.mubr.bf16.mxu0 0
      %484 = vmatmul.mubr.bf16.gmra.mrb[0].mxu0 %v370
      %v485 = vpop.f32.mrb[0].mxu0
      %v486 = vadd.f32 %v253, %v485
      %v487 = vpop.f32.mrb[0].mxu0
      %v488 = vpop.f32.mrb[0].mxu0
      %v489 = vadd.f32 %v253, %v488
      %v490 = vpop.f32.mrb[0].mxu0
      %491 = vmatprep.mubr.bf16.mxu0 0
      %492 = vmatmul.mubr.bf16.gmra.mrb[0].mxu0 %v373
      %v493 = vpop.f32.mrb[0].mxu0
      %v494 = vadd.f32 %v253, %v493
      %v495 = vpop.f32.mrb[0].mxu0
      %v496 = vpop.f32.mrb[0].mxu0
      %v497 = vadd.f32 %v253, %v496
      %v498 = vpop.f32.mrb[0].mxu0
      %499 = vmatprep.mubr.bf16.mxu0 0
      %500 = vmatmul.mubr.bf16.gmra.mrb[0].mxu0 %v376
      %v501 = vpop.f32.mrb[0].mxu0
      %v502 = vadd.f32 %v253, %v501
      %v503 = vpop.f32.mrb[0].mxu0
      %v504 = vpop.f32.mrb[0].mxu0
      %v505 = vadd.f32 %v253, %v504
      %v506 = vpop.f32.mrb[0].mxu0
      %507 = vmatprep.mubr.bf16.mxu0 0
      %508 = vmatmul.mubr.bf16.gmra.mrb[0].mxu0 %v379
      %v509 = vpop.f32.mrb[0].mxu0
      %v510 = vadd.f32 %v253, %v509
      %v511 = vpop.f32.mrb[0].mxu0
      %v512 = vpop.f32.mrb[0].mxu0
      %v513 = vadd.f32 %v253, %v512
      %v514 = vpop.f32.mrb[0].mxu0
      %515 = vmatprep.mubr.bf16.mxu0 0
      %516 = vmatmul.mubr.bf16.gmra.mrb[0].mxu0 %v382
      %v517 = vpop.f32.mrb[0].mxu0
      %v518 = vadd.f32 %v253, %v517
      %v519 = vpop.f32.mrb[0].mxu0
      %v520 = vpop.f32.mrb[0].mxu0
      %v521 = vadd.f32 %v253, %v520
      %v522 = vpop.f32.mrb[0].mxu0
      %523 = vmatprep.mubr.bf16.mxu0 0
      %524 = vmatmul.mubr.bf16.gmra.mrb[0].mxu0 %v385
      %v525 = vpop.f32.mrb[0].mxu0
      %v526 = vadd.f32 %v253, %v525
      %v527 = vpop.f32.mrb[0].mxu0
      %v528 = vpop.f32.mrb[0].mxu0
      %v529 = vadd.f32 %v253, %v528
      %v530 = vpop.f32.mrb[0].mxu0
      %531 = vmatprep.mubr.bf16.mxu0 0
      %532 = vmatmul.mubr.bf16.gmra.mrb[0].mxu0 %v388
      %v533 = vpop.f32.mrb[0].mxu0
      %v534 = vadd.f32 %v253, %v533
      %v535 = vpop.f32.mrb[0].mxu0
      %v536 = vpop.f32.mrb[0].mxu0
      %v537 = vadd.f32 %v253, %v536
      %v538 = vpop.f32.mrb[0].mxu0
      %539 = vmatprep.mubr.bf16.mxu0 0
      %540 = vmatmul.mubr.bf16.gmra.mrb[0].mxu0 %v391
      %v541 = vpop.f32.mrb[0].mxu0
      %v542 = vadd.f32 %v253, %v541
      %v543 = vpop.f32.mrb[0].mxu0
      %v544 = vpop.f32.mrb[0].mxu0
      %v545 = vadd.f32 %v253, %v544
      %v546 = vpop.f32.mrb[0].mxu0
      %547 = vmatprep.mubr.bf16.mxu0 0
      %548 = vmatmul.mubr.bf16.gmra.mrb[0].mxu0 %v394
      %v549 = vpop.f32.mrb[0].mxu0
      %v550 = vadd.f32 %v253, %v549
      %v551 = vpop.f32.mrb[0].mxu0
      %v552 = vpop.f32.mrb[0].mxu0
      %v553 = vadd.f32 %v253, %v552
      %v554 = vpop.f32.mrb[0].mxu0
      %555 = vmatprep.mubr.bf16.mxu0 0
      %556 = vmatmul.mubr.bf16.gmra.mrb[0].mxu0 %v397
      %v557 = vpop.f32.mrb[0].mxu0
      %v558 = vadd.f32 %v253, %v557
      %v559 = vpop.f32.mrb[0].mxu0
      %v560 = vpop.f32.mrb[0].mxu0
      %v561 = vadd.f32 %v253, %v560
      %v562 = vpop.f32.mrb[0].mxu0
      %563 = vdwg.mxu0
      %v564 = vmax.f32 %v438, 0.0
      %v565 = vmax.f32 %v441, 0.0
      %v566 = vmax.f32 %v446, 0.0
      %v567 = vmax.f32 %v449, 0.0
      %v568 = vmax.f32 %v454, 0.0
      %v569 = vmax.f32 %v457, 0.0
      %v570 = vmax.f32 %v462, 0.0
      %v571 = vmax.f32 %v465, 0.0
      %v572 = vmax.f32 %v470, 0.0
      %v573 = vmax.f32 %v473, 0.0
      %v574 = vmax.f32 %v478, 0.0
      %v575 = vmax.f32 %v481, 0.0
      %v576 = vmax.f32 %v486, 0.0
      %v577 = vmax.f32 %v489, 0.0
      %v578 = vmax.f32 %v494, 0.0
      %v579 = vmax.f32 %v497, 0.0
      %v580 = vmax.f32 %v502, 0.0
      %v581 = vmax.f32 %v505, 0.0
      %v582 = vmax.f32 %v510, 0.0
      %v583 = vmax.f32 %v513, 0.0
      %v584 = vmax.f32 %v518, 0.0
      %v585 = vmax.f32 %v521, 0.0
      %v586 = vmax.f32 %v526, 0.0
      %v587 = vmax.f32 %v529, 0.0
      %v588 = vmax.f32 %v534, 0.0
      %v589 = vmax.f32 %v537, 0.0
      %v590 = vmax.f32 %v542, 0.0
      %v591 = vmax.f32 %v545, 0.0
      %v592 = vmax.f32 %v550, 0.0
      %v593 = vmax.f32 %v553, 0.0
      %v594 = vmax.f32 %v558, 0.0
      %v595 = vmax.f32 %v561, 0.0
      %596 = vst [vmem:[%s208] sm:$0xff] %v564
      %597 = vst [vmem:[%s208 + $0x8] sm:$0xff] %v565
      %598 = vst [vmem:[%s208 + $0x10] sm:$0xff] %v566
      %599 = vst [vmem:[%s208 + $0x18] sm:$0xff] %v567
      %600 = vst [vmem:[%s208 + $0x20] sm:$0xff] %v568
      %601 = vst [vmem:[%s208 + $0x28] sm:$0xff] %v569
      %602 = vst [vmem:[%s208 + $0x30] sm:$0xff] %v570
      %603 = vst [vmem:[%s208 + $0x38] sm:$0xff] %v571
      %604 = vst [vmem:[%s208 + $0x40] sm:$0xff] %v572
      %605 = vst [vmem:[%s208 + $0x48] sm:$0xff] %v573
      %606 = vst [vmem:[%s208 + $0x50] sm:$0xff] %v574
      %607 = vst [vmem:[%s208 + $0x58] sm:$0xff] %v575
      %608 = vst [vmem:[%s208 + $0x60] sm:$0xff] %v576
      %609 = vst [vmem:[%s208 + $0x68] sm:$0xff] %v577
      %610 = vst [vmem:[%s208 + $0x70] sm:$0xff] %v578
      %611 = vst [vmem:[%s208 + $0x78] sm:$0xff] %v579
      %612 = vst [vmem:[%s208 + $0x80] sm:$0xff] %v580
      %613 = vst [vmem:[%s208 + $0x88] sm:$0xff] %v581
      %614 = vst [vmem:[%s208 + $0x90] sm:$0xff] %v582
      %615 = vst [vmem:[%s208 + $0x98] sm:$0xff] %v583
      %616 = vst [vmem:[%s208 + $0xa0] sm:$0xff] %v584
      %617 = vst [vmem:[%s208 + $0xa8] sm:$0xff] %v585
      %618 = vst [vmem:[%s208 + $0xb0] sm:$0xff] %v586
      %619 = vst [vmem:[%s208 + $0xb8] sm:$0xff] %v587
      %620 = vst [vmem:[%s208 + $0xc0] sm:$0xff] %v588
      %621 = vst [vmem:[%s208 + $0xc8] sm:$0xff] %v589
      %622 = vst [vmem:[%s208 + $0xd0] sm:$0xff] %v590
      %623 = vst [vmem:[%s208 + $0xd8] sm:$0xff] %v591
      %624 = vst [vmem:[%s208 + $0xe0] sm:$0xff] %v592
      %625 = vst [vmem:[%s208 + $0xe8] sm:$0xff] %v593
      %626 = vst [vmem:[%s208 + $0xf0] sm:$0xff] %v594
      %627 = vst [vmem:[%s208 + $0xf8] sm:$0xff] %v595
      %s628 = smul.u32 32, %s19
      %p629 = scmp.lt.s32.totalorder %s18, 1
      %s630 = scalar_select %p629, %s18, 1
      %p631 = scmp.lt.s32.totalorder %s628, 31
      %s632 = scalar_select %p631, %s628, 31
      %s633 = smul.addr %s630, 32
      %s634 = sadd.s32 %s632, %s633
      %s635 = smul.addr %s634, 8
      %s636 = scalar_lea.vmem %s3, %s635
      // Predicated region
      $region33: #{basic_conv2d.1} parent=31 // pred_check
        %p637 = pneg %p116
      $region34: #{basic_conv2d.1} parent=31 // pred_check_branch
        %639 = sbr.rel (%p637) target = $region36
      $region35: #{basic_conv2d.1} parent=31 // pred_region
        %s640 = smul.u32 32, %s19
      $region36: #{basic_conv2d.1} parent=31 // pred_fallthru
        _
    $region32: #{basic_conv2d.1} parent=5 // pred_fallthru
      _
    %p641 = scmp.le.s32.totalorder 2, %s9
    // Predicated region
    $region37: #{basic_conv2d.1} parent=5 // pred_check
      %p642 = pneg %p641
    $region38: #{basic_conv2d.1} parent=5 // pred_check_branch
      %644 = sbr.rel (%p642) target = $region40
    $region39: #{basic_conv2d.1} parent=5 // pred_region
      %s645 = ssub.s32 %s9, 2
      // Predicated region
      $region41: #{basic_conv2d.1} parent=39 // pred_check
        %p646 = pneg %p122
      $region42: #{basic_conv2d.1} parent=39 // pred_check_branch
        %648 = sbr.rel (%p646) target = $region44
      $region43: #{basic_conv2d.1} parent=39 // pred_region
        %s649 = smul.u32 32, %s21
        %p650 = scmp.lt.s32.totalorder %s20, 1
        %s651 = scalar_select %p650, %s20, 1
        %p652 = scmp.lt.s32.totalorder %s649, 31
        %s653 = scalar_select %p652, %s649, 31
        %s654 = smul.addr %s651, 32
        %s655 = sadd.s32 %s653, %s654
        %s656 = smul.addr %s655, 8
        %s657 = scalar_lea.vmem %s3, %s656
      $region44: #{basic_conv2d.1} parent=39 // pred_fallthru
        _
    $region40: #{basic_conv2d.1} parent=5 // pred_fallthru
      _
  $region6: #{basic_conv2d.1} parent=0 // loop_footer
    %s13 = sadd.s32 1, %s9
  $region7: #{basic_conv2d.1} parent=0 // loop_footer_branch
    %8 = sbr.rel target = $region3
  $region8: #{basic_conv2d.1} parent=0 // loop_exit
    _

</llo_original>
